<compile_context>
chip_gen: v5e
topology: v5e:2x2
jax: 0.10.0
libtpu: 0.0.40
codegen_flags: <defaults>
</compile_context>

<pallas_src>
import functools

import numpy as np
import jax
import jax.numpy as jnp
from jax import lax
from jax.experimental import pallas as pl
from jax.experimental.pallas import tpu as pltpu


# ---------------------------------------------------------------------------
# Kernel
# ---------------------------------------------------------------------------
def _contrast_partial_kernel(out_ref, lbl_ref, mask_ref, part_ref, *,
                             row_stride, chunk, num_chunks):
    """Partial sum of squared contrast-depth differences for one batch tile.

    out_ref / lbl_ref : (TB, HWp)  one flattened (lane-padded) depth map per row
    mask_ref          : (1, HWp)   1.0 on interior pixels (valid 3x3 conv outputs)
    part_ref          : (8, 128)   broadcast partial sum (lane-dense unmasked store)
    """
    hwp = out_ref.shape[1]
    # All-ones LHS turns the per-chunk sublane reduction into an MXU matmul
    # (the MXU is otherwise idle).  Every row of the product is identical, so
    # the final scalar is divided by 8.
    ones_lhs = jnp.ones((8, chunk), jnp.float32)

    def box3(v):
        # Separable 3x3 box filter on the flattened (lane) axis: shifts of +-1
        # then +-W.  pltpu.roll issues on the XLU, keeping VPU slots free.
        # Circular wrap / lane-padding garbage only lands on border pixels,
        # which the interior mask removes.
        rs = v + pltpu.roll(v, 1, 1) + pltpu.roll(v, hwp - 1, 1)
        return (rs + pltpu.roll(rs, row_stride, 1)
                   + pltpu.roll(rs, hwp - row_stride, 1))

    def body(c, row_acc):
        r0 = pl.multiple_of(c * chunk, chunk)
        d = (out_ref[pl.ds(r0, chunk), :].astype(jnp.float32)
             - lbl_ref[pl.ds(r0, chunk), :].astype(jnp.float32))
        d2 = d * d
        # sum over the 8 `neighbor - center` taps:
        #   sum_n ((o_n-o_c)-(l_n-l_c))^2 = sum_n (d_n-d_c)^2
        #                                 = box3(d^2) - 2*d*box3(d) + 9*d^2
        acc = box3(d2) - 2.0 * d * box3(d) + 9.0 * d2
        # Reduce the chunk (sublane) axis on the MXU.
        return row_acc + jnp.dot(ones_lhs, acc,
                                 preferred_element_type=jnp.float32)

    row_acc = lax.fori_loop(0, num_chunks, body,
                            jnp.zeros((8, hwp), jnp.float32), unroll=True)
    # Single masked cross-lane reduce per grid step (8 identical rows -> /8).
    total = jnp.sum(row_acc * mask_ref[...]) * 0.125
    part_ref[...] = jnp.zeros(part_ref.shape, jnp.float32) + total


# ---------------------------------------------------------------------------
# Wrapper
# ---------------------------------------------------------------------------
def _choose_tiling(B, HWp, *, max_rows=512, input_vmem_budget=8 << 20):
    """Pick (rows per grid step, number of grid steps).

    Sized so 2 inputs x 2 pipeline buffers x tb x HWp x 4 B stays inside a
    conservative VMEM budget (fits v5e's 16 MiB scoped default and v7x's
    64 MiB physical VMEM), while keeping >= 2 grid steps whenever the batch
    allows it so v7x megacore uses both TensorCores.
    """
    # NOTE: very large maps (16 * 8 * HWp bytes exceeding VMEM) would need an
    # additional spatial grid axis; CDCN uses 32x32 maps so this is not hit.
    per_row = 2 * 2 * HWp * 4
    cap = max(8, min(max_rows, (input_vmem_budget // per_row) // 8 * 8))
    b8 = ((B + 7) // 8) * 8                      # batch rounded to sublane multiple
    if b8 <= 8:
        tb = 8
    else:
        tb = min(cap, max(8, (b8 // 2) // 8 * 8))  # >= 2 steps until tb hits cap
    if tb >= 64:
        tb = (tb // 64) * 64                     # keep the in-kernel chunk loop short
    nb = -(-B // tb)                             # ceil(B / tb)
    return tb, nb


@functools.lru_cache(maxsize=None)
def _interior_mask_np(H, W, HWp):
    yy, xx = np.mgrid[0:H, 0:W]
    m = ((yy >= 1) & (yy <= H - 2) & (xx >= 1) & (xx <= W - 2)).astype(np.float32)
    m = m.reshape(1, H * W)
    if HWp != H * W:
        m = np.pad(m, ((0, 0), (0, HWp - H * W)))
    return m


def _contrast_depth_loss_impl(out, label):
    """out, label: (B, H, W). Returns MSE(contrast_depth(out), contrast_depth(label))."""
    assert out.shape == label.shape and out.ndim == 3
    B, H, W = out.shape
    assert H >= 3 and W >= 3, "contrast depth needs at least a 3x3 map"
    HW = H * W
    HWp = ((HW + 127) // 128) * 128              # lane-dense flattened length

    tb, nb = _choose_tiling(B, HWp)
    Bp = nb * tb
    chunk = next(c for c in (64, 32, 16, 8) if tb % c == 0)
    num_chunks = tb // chunk

    o2 = out.reshape(B, HW)
    l2 = label.reshape(B, HW)
    if Bp != B or HWp != HW:
        # Zero padding contributes exactly zero to the masked sum.  CDCN's
        # 32x32 maps with a multiple-of-8 batch hit the no-pad fast path.
        pad = ((0, Bp - B), (0, HWp - HW))
        o2 = jnp.pad(o2, pad)
        l2 = jnp.pad(l2, pad)

    mask = jnp.asarray(_interior_mask_np(H, W, HWp))
    itemsize = o2.dtype.itemsize

    partials = pl.pallas_call(
        functools.partial(_contrast_partial_kernel, row_stride=W,
                          chunk=chunk, num_chunks=num_chunks),
        out_shape=jax.ShapeDtypeStruct((nb * 8, 128), jnp.float32),
        grid=(nb,),
        in_specs=[
            pl.BlockSpec((tb, HWp), lambda b: (b, 0)),
            pl.BlockSpec((tb, HWp), lambda b: (b, 0)),
            pl.BlockSpec((1, HWp), lambda b: (0, 0)),
        ],
        out_specs=pl.BlockSpec((8, 128), lambda b: (b, 0)),
        compiler_params=pltpu.CompilerParams(dimension_semantics=("parallel",)),
        cost_estimate=pl.CostEstimate(
            flops=int(24 * Bp * HWp),
            transcendentals=0,
            bytes_accessed=int(2 * Bp * HWp * itemsize + nb * 8 * 128 * 4)),
    )(o2, l2, mask)

    per_tile = partials.reshape(nb, 8, 128)[:, 0, 0]
    n_elems = 8.0 * B * (H - 2) * (W - 2)        # MSE mean over B*8*(H-2)*(W-2)
    return jnp.sum(per_tile) / jnp.float32(n_elems)


# jit so the mask build, padding and final tiny reduce are traced once per
# shape and fused around the pallas_call (per-call host work would otherwise
# be a visible fraction of a microsecond-scale kernel).
contrast_depth_loss = jax.jit(_contrast_depth_loss_impl)


# ---------------------------------------------------------------------------
# Pure-JAX reference mirroring the PyTorch grouped conv + MSELoss (mean).
# ---------------------------------------------------------------------------
_NEIGHBOR_OFFSETS = (
    (0, 0), (0, 1), (0, 2),
    (1, 0),         (1, 2),
    (2, 0), (2, 1), (2, 2),
)


def _reference_loss(out, label):
    def contrast(x):
        _, H, W = x.shape
        Ho, Wo = H - 2, W - 2
        center = x[:, 1:1 + Ho, 1:1 + Wo]
        return jnp.stack(
            [x[:, dy:dy + Ho, dx:dx + Wo] - center for dy, dx in _NEIGHBOR_OFFSETS],
            axis=1,
        )  # (B, 8, Ho, Wo)
    diff = contrast(out) - contrast(label)
    return jnp.mean(diff * diff)


if __name__ == "__main__":
    key = jax.random.PRNGKey(0)
    # CDCN 32x32 maps with a multi-step grid (+ batch padding), a tiny batch,
    # and an H*W not divisible by 128 (lane-pad path).
    cases = [(20, 32, 32), (2, 16, 16), (3, 10, 12)]
    for shape in cases:
        key, k1, k2 = jax.random.split(key, 3)
        out = jax.random.uniform(k1, shape, dtype=jnp.float32)
        label = jax.random.uniform(k2, shape, dtype=jnp.float32)
        loss = jax.block_until_ready(contrast_depth_loss(out, label))
        ref = _reference_loss(out, label)
        assert jnp.allclose(loss, ref, rtol=1e-4, atol=1e-6), (shape, float(loss), float(ref))
    print("KERNEL_OK")
</pallas_src>

<mosaic_0001>
module attributes {stable_mosaic.version = 11 : i64} {
  func.func @_contrast_partial_kernel(%arg0: i32, %arg1: memref<8x1024xf32, #tpu.memory_space<vmem>>, %arg2: memref<8x1024xf32, #tpu.memory_space<vmem>>, %arg3: memref<1x1024xf32, #tpu.memory_space<vmem>>, %arg4: memref<8x128xf32, #tpu.memory_space<vmem>>) attributes {dimension_semantics = [#tpu.dimension_semantics<parallel>], iteration_bounds = array<i64: 3>, scalar_prefetch = 0 : i64, scratch_operands = 0 : i64, tpu.core_type = #tpu.core_type<tc>, window_params = [{transform_indices = @transform_0, window_bounds = array<i64: 8, 1024>}, {transform_indices = @transform_1, window_bounds = array<i64: 8, 1024>}, {pipeline_mode = #tpu.pipeline_mode<synchronous>, transform_indices = @transform_2, window_bounds = array<i64: 1, 1024>}, {transform_indices = @transform_3, window_bounds = array<i64: 8, 128>}]} {
    %cst = arith.constant 1.000000e+00 : f32
    %0 = vector.broadcast %cst : f32 to vector<8x8xf32>
    %cst_0 = arith.constant 0.000000e+00 : f32
    %1 = vector.broadcast %cst_0 : f32 to vector<8x1024xf32>
    %c0_i32 = arith.constant 0 : i32
    %c8_i32 = arith.constant 8 : i32
    %2 = arith.muli %c0_i32, %c8_i32 : i32
    %3 = tpu.assume_multiple %2, 8 : i32
    %4 = arith.index_cast %3 : i32 to index
    %c0 = arith.constant 0 : index
    %5 = vector.load %arg1[%4, %c0] : memref<8x1024xf32, #tpu.memory_space<vmem>>, vector<8x1024xf32>
    %6 = arith.index_cast %3 : i32 to index
    %c0_1 = arith.constant 0 : index
    %7 = vector.load %arg2[%6, %c0_1] : memref<8x1024xf32, #tpu.memory_space<vmem>>, vector<8x1024xf32>
    %8 = arith.subf %5, %7 : vector<8x1024xf32>
    %9 = arith.mulf %8, %8 : vector<8x1024xf32>
    %c1_i32 = arith.constant 1 : i32
    %10 = tpu.dynamic_rotate %9 by %c1_i32 dim 1 : vector<8x1024xf32>, i32 -> vector<8x1024xf32>
    %11 = arith.addf %9, %10 : vector<8x1024xf32>
    %c1023_i32 = arith.constant 1023 : i32
    %12 = tpu.dynamic_rotate %9 by %c1023_i32 dim 1 : vector<8x1024xf32>, i32 -> vector<8x1024xf32>
    %13 = arith.addf %11, %12 : vector<8x1024xf32>
    %c32_i32 = arith.constant 32 : i32
    %14 = tpu.dynamic_rotate %13 by %c32_i32 dim 1 : vector<8x1024xf32>, i32 -> vector<8x1024xf32>
    %15 = arith.addf %13, %14 : vector<8x1024xf32>
    %c992_i32 = arith.constant 992 : i32
    %16 = tpu.dynamic_rotate %13 by %c992_i32 dim 1 : vector<8x1024xf32>, i32 -> vector<8x1024xf32>
    %17 = arith.addf %15, %16 : vector<8x1024xf32>
    %cst_2 = arith.constant 2.000000e+00 : f32
    %18 = vector.broadcast %cst_2 : f32 to vector<8x1024xf32>
    %19 = arith.mulf %18, %8 : vector<8x1024xf32>
    %c1_i32_3 = arith.constant 1 : i32
    %20 = tpu.dynamic_rotate %8 by %c1_i32_3 dim 1 : vector<8x1024xf32>, i32 -> vector<8x1024xf32>
    %21 = arith.addf %8, %20 : vector<8x1024xf32>
    %c1023_i32_4 = arith.constant 1023 : i32
    %22 = tpu.dynamic_rotate %8 by %c1023_i32_4 dim 1 : vector<8x1024xf32>, i32 -> vector<8x1024xf32>
    %23 = arith.addf %21, %22 : vector<8x1024xf32>
    %c32_i32_5 = arith.constant 32 : i32
    %24 = tpu.dynamic_rotate %23 by %c32_i32_5 dim 1 : vector<8x1024xf32>, i32 -> vector<8x1024xf32>
    %25 = arith.addf %23, %24 : vector<8x1024xf32>
    %c992_i32_6 = arith.constant 992 : i32
    %26 = tpu.dynamic_rotate %23 by %c992_i32_6 dim 1 : vector<8x1024xf32>, i32 -> vector<8x1024xf32>
    %27 = arith.addf %25, %26 : vector<8x1024xf32>
    %28 = arith.mulf %19, %27 : vector<8x1024xf32>
    %29 = arith.subf %17, %28 : vector<8x1024xf32>
    %cst_7 = arith.constant 9.000000e+00 : f32
    %30 = vector.broadcast %cst_7 : f32 to vector<8x1024xf32>
    %31 = arith.mulf %30, %9 : vector<8x1024xf32>
    %32 = arith.addf %29, %31 : vector<8x1024xf32>
    %cst_8 = arith.constant dense<0.000000e+00> : vector<8x1024xf32>
    %33 = tpu.matmul %0, %32, %cst_8 {dimension_numbers = #tpu.dot_dimension_numbers<[1], [0], [0], [1], [0, 0, 1, 1], [], []>} : vector<8x8xf32>, vector<8x1024xf32>, vector<8x1024xf32> -> vector<8x1024xf32>
    %34 = arith.addf %1, %33 : vector<8x1024xf32>
    %c1_i32_9 = arith.constant 1 : i32
    %c0_10 = arith.constant 0 : index
    %c0_11 = arith.constant 0 : index
    %35 = vector.load %arg3[%c0_10, %c0_11] : memref<1x1024xf32, #tpu.memory_space<vmem>>, vector<1x1024xf32>
    %36 = vector.broadcast %35 : vector<1x1024xf32> to vector<8x1024xf32>
    %37 = arith.mulf %34, %36 : vector<8x1024xf32>
    %38 = vector.shape_cast %37 : vector<8x1024xf32> to vector<1x8x1024xf32>
    %cst_12 = arith.constant dense<0.000000e+00> : vector<1xf32>
    %39 = vector.multi_reduction <add>, %38, %cst_12 [1, 2] : vector<1x8x1024xf32> to vector<1xf32>
    %40 = vector.shape_cast %39 : vector<1xf32> to vector<1x1x1xf32>
    %41 = vector.extract %40[0, 0, 0] : f32 from vector<1x1x1xf32>
    %cst_13 = arith.constant 1.250000e-01 : f32
    %42 = arith.mulf %41, %cst_13 : f32
    %cst_14 = arith.constant 0.000000e+00 : f32
    %43 = vector.broadcast %cst_14 : f32 to vector<8x128xf32>
    %44 = vector.broadcast %42 : f32 to vector<8x128xf32>
    %45 = arith.addf %43, %44 : vector<8x128xf32>
    %c0_15 = arith.constant 0 : index
    %c0_16 = arith.constant 0 : index
    %46 = vector.load %arg4[%c0_15, %c0_16] : memref<8x128xf32, #tpu.memory_space<vmem>>, vector<8x128xf32>
    tpu.vector_store %arg4[%c0_15, %c0_16], %45 {strides = array<i32>} : memref<8x128xf32, #tpu.memory_space<vmem>>, vector<8x128xf32>,
    return
  }
  func.func @transform_0(%arg0: i32) -> (i32, i32) {
    %c0_i32 = arith.constant 0 : i32
    %c0_i32_0 = arith.constant 0 : i32
    return %arg0, %c0_i32 : i32, i32
  }
  func.func @transform_1(%arg0: i32) -> (i32, i32) {
    %c0_i32 = arith.constant 0 : i32
    %c0_i32_0 = arith.constant 0 : i32
    return %arg0, %c0_i32 : i32, i32
  }
  func.func @transform_2(%arg0: i32) -> (i32, i32) {
    %c0_i32 = arith.constant 0 : i32
    %c0_i32_0 = arith.constant 0 : i32
    %c0_i32_1 = arith.constant 0 : i32
    return %c0_i32, %c0_i32_0 : i32, i32
  }
  func.func @transform_3(%arg0: i32) -> (i32, i32) {
    %c0_i32 = arith.constant 0 : i32
    %c0_i32_0 = arith.constant 0 : i32
    return %arg0, %c0_i32 : i32, i32
  }
}

</mosaic_0001>

<llo_original>
// kernel: _contrast_depth_loss_impl.1
$region0: #{_contrast_depth_loss_impl.1}
  #allocation0 [shape = 'u32[]', space=smem, size = 0x4, offset = 0x4, fixed_abs, tag = 'smem constant byte address 0x4 - core index']
  #allocation1 [shape = 'u32[72,128]{1,0:T(1,128)}', space=vmem, size = 0x9000, scoped, tag = 'internal scratch']
  %s0 = inlined_call_operand.vmem [shape: f32[24,1024], index: 0, kind: input, shape index: {}]
  %s1 = inlined_call_operand.vmem [shape: f32[24,1024], index: 1, kind: input, shape index: {}]
  %s2 = inlined_call_operand.vmem [shape: f32[1,1024], index: 2, kind: input, shape index: {}]
  %s3 = inlined_call_operand.vmem [shape: f32[24,128], index: 3, kind: output, shape index: {}]
  %s4 = sld [smem:[#allocation0]]
  $region45: #{_contrast_depth_loss_impl.1} parent=0
    _
  %s6 = ssub.s32 1, %s4
  %s7 = scalar_select 0, %s6, %s4
  loop: start=0, step=1, limit=5
  $region2: #{_contrast_depth_loss_impl.1} parent=0 // loop_pre_header
    _
  $region3: #{_contrast_depth_loss_impl.1} parent=0 // loop_header
    %s9 = sphi 0, %s13
    %p10 = scmp.ge.s32.totalorder %s9, 5
    %s19 = sphi 0, %s21
    %s22 = sphi 0, %s19
    %s23 = sphi 0, %s22
    %s39 = sphi 0, %s23
    %s45 = sphi 0, %s47
    %s48 = sphi 0, %s45
    %s49 = sphi 0, %s48
    %s65 = sphi 0, %s49
    %s69 = sphi 0, %s69
    %s71 = sphi 0, %s69
    %s72 = sphi 0, %s71
    %s86 = sphi 0, %s72
    %s92 = sphi 0, %s94
    %s95 = sphi 0, %s92
    %s96 = sphi 0, %s95
    %s112 = sphi 0, %s96
  $region4: #{_contrast_depth_loss_impl.1} parent=0 // loop_header_branch
    %12 = sbr.rel (%p10) target = $region8
  $region5: #{_contrast_depth_loss_impl.1} parent=0 // loop_body
    %s14 = ssub.s32 %s9, 1
    %s15 = ssub.s32 %s9, 2
    %s16 = sadd.s32 %s9, 1
    %s17 = ssub.s32 %s9, %s16
    %p18 = scmp.eq.s32.totalorder %s17, 0
    %s20 = sadd.s32 %s19, 1
    %s21 = scalar_select %p18, %s19, %s20
    %p24 = pneg %p18
    %p25 = scmp.eq.s32.totalorder %s9, 2
    %p26 = por %p24, %p25
    %p27 = scmp.ne.s32.totalorder %s19, %s22
    %p28 = scmp.eq.s32.totalorder %s9, 0
    %p29 = por %p27, %p28
    %p30 = scmp.ne.s32.totalorder %s19, %s22
    %p31 = scmp.eq.s32.totalorder %s14, 2
    %p32 = por %p30, %p31
    %p33 = scmp.ne.s32.totalorder %s22, %s23
    %p34 = scmp.eq.s32.totalorder %s14, 0
    %p35 = por %p33, %p34
    %p36 = scmp.ne.s32.totalorder %s22, %s23
    %p37 = scmp.eq.s32.totalorder %s15, 2
    %p38 = por %p36, %p37
    %p40 = scmp.ne.s32.totalorder %s23, %s39
    %p41 = scmp.eq.s32.totalorder %s15, 0
    %p42 = por %p40, %p41
    %s43 = ssub.s32 %s9, %s16
    %p44 = scmp.eq.s32.totalorder %s43, 0
    %s46 = sadd.s32 %s45, 1
    %s47 = scalar_select %p44, %s45, %s46
    %p50 = pneg %p44
    %p51 = scmp.eq.s32.totalorder %s9, 2
    %p52 = por %p50, %p51
    %p53 = scmp.ne.s32.totalorder %s45, %s48
    %p54 = scmp.eq.s32.totalorder %s9, 0
    %p55 = por %p53, %p54
    %p56 = scmp.ne.s32.totalorder %s45, %s48
    %p57 = scmp.eq.s32.totalorder %s14, 2
    %p58 = por %p56, %p57
    %p59 = scmp.ne.s32.totalorder %s48, %s49
    %p60 = scmp.eq.s32.totalorder %s14, 0
    %p61 = por %p59, %p60
    %p62 = scmp.ne.s32.totalorder %s48, %s49
    %p63 = scmp.eq.s32.totalorder %s15, 2
    %p64 = por %p62, %p63
    %p66 = scmp.ne.s32.totalorder %s49, %s65
    %p67 = scmp.eq.s32.totalorder %s15, 0
    %p68 = por %p66, %p67
    %s70 = sadd.s32 %s69, 1
    %p73 = scmp.eq.s32.totalorder %s9, 2
    %p74 = scmp.ne.s32.totalorder %s69, %s71
    %p75 = scmp.eq.s32.totalorder %s9, 0
    %p76 = por %p74, %p75
    %p77 = scmp.ne.s32.totalorder %s69, %s71
    %p78 = scmp.eq.s32.totalorder %s14, 2
    %p79 = por %p77, %p78
    %p80 = scmp.ne.s32.totalorder %s71, %s72
    %p81 = scmp.eq.s32.totalorder %s14, 0
    %p82 = por %p80, %p81
    %p83 = scmp.ne.s32.totalorder %s71, %s72
    %p84 = scmp.eq.s32.totalorder %s15, 2
    %p85 = por %p83, %p84
    %p87 = scmp.ne.s32.totalorder %s72, %s86
    %p88 = scmp.eq.s32.totalorder %s15, 0
    %p89 = por %p87, %p88
    %s90 = ssub.s32 %s9, %s16
    %p91 = scmp.eq.s32.totalorder %s90, 0
    %s93 = sadd.s32 %s92, 1
    %s94 = scalar_select %p91, %s92, %s93
    %p97 = pneg %p91
    %p98 = scmp.eq.s32.totalorder %s9, 2
    %p99 = por %p97, %p98
    %p100 = scmp.ne.s32.totalorder %s92, %s95
    %p101 = scmp.eq.s32.totalorder %s9, 0
    %p102 = por %p100, %p101
    %p103 = scmp.ne.s32.totalorder %s92, %s95
    %p104 = scmp.eq.s32.totalorder %s14, 2
    %p105 = por %p103, %p104
    %p106 = scmp.ne.s32.totalorder %s95, %s96
    %p107 = scmp.eq.s32.totalorder %s14, 0
    %p108 = por %p106, %p107
    %p109 = scmp.ne.s32.totalorder %s95, %s96
    %p110 = scmp.eq.s32.totalorder %s15, 2
    %p111 = por %p109, %p110
    %p113 = scmp.ne.s32.totalorder %s96, %s112
    %p114 = scmp.eq.s32.totalorder %s15, 0
    %p115 = por %p113, %p114
    %p116 = scmp.le.s32.totalorder 1, %s9
    %p117 = scmp.lt.s32.totalorder %s9, 4
    %p118 = pnand %p116, %p117
    %p119 = pneg %p118
    // Predicated region
    $region9: #{_contrast_depth_loss_impl.1} parent=5 // pred_check
      _
    $region10: #{_contrast_depth_loss_impl.1} parent=5 // pred_check_branch
      %121 = sbr.rel (%p118) target = $region12
    $region11: #{_contrast_depth_loss_impl.1} parent=5 // pred_region
      %s122 = ssub.s32 %s9, 1
      // Predicated region
      $region13: #{_contrast_depth_loss_impl.1} parent=11 // pred_check
        %p123 = pneg %p82
      $region14: #{_contrast_depth_loss_impl.1} parent=11 // pred_check_branch
        %125 = sbr.rel (%p123) target = $region16
      $region15: #{_contrast_depth_loss_impl.1} parent=11 // pred_region
        _
      $region16: #{_contrast_depth_loss_impl.1} parent=11 // pred_fallthru
        _
    $region12: #{_contrast_depth_loss_impl.1} parent=5 // pred_fallthru
      _
    %p126 = scmp.lt.s32.totalorder %s9, 3
    // Predicated region
    $region17: #{_contrast_depth_loss_impl.1} parent=5 // pred_check
      %p127 = pneg %p126
    $region18: #{_contrast_depth_loss_impl.1} parent=5 // pred_check_branch
      %129 = sbr.rel (%p127) target = $region20
    $region19: #{_contrast_depth_loss_impl.1} parent=5 // pred_region
      // Predicated region
      $region21: #{_contrast_depth_loss_impl.1} parent=19 // pred_check
        %p130 = pneg %p29
      $region22: #{_contrast_depth_loss_impl.1} parent=19 // pred_check_branch
        %132 = sbr.rel (%p130) target = $region24
      $region23: #{_contrast_depth_loss_impl.1} parent=19 // pred_region
        %p133 = scmp.lt.s32.totalorder %s9, 2
        %s134 = scalar_select %p133, %s9, 2
        %s135 = smul.addr %s134, 8
        %s136 = smul.addr %s135, 8
        %s137 = scalar_lea.vmem %s0, %s136
      $region24: #{_contrast_depth_loss_impl.1} parent=19 // pred_fallthru
        _
      // Predicated region
      $region25: #{_contrast_depth_loss_impl.1} parent=19 // pred_check
        %p138 = pneg %p55
      $region26: #{_contrast_depth_loss_impl.1} parent=19 // pred_check_branch
        %140 = sbr.rel (%p138) target = $region28
      $region27: #{_contrast_depth_loss_impl.1} parent=19 // pred_region
        %p141 = scmp.lt.s32.totalorder %s9, 2
        %s142 = scalar_select %p141, %s9, 2
        %s143 = smul.addr %s142, 8
        %s144 = smul.addr %s143, 8
        %s145 = scalar_lea.vmem %s1, %s144
      $region28: #{_contrast_depth_loss_impl.1} parent=19 // pred_fallthru
        _
    $region20: #{_contrast_depth_loss_impl.1} parent=5 // pred_fallthru
      _
    %p146 = scmp.le.s32.totalorder 1, %s9
    %p147 = scmp.lt.s32.totalorder %s9, 4
    %p148 = pnand %p146, %p147
    %p149 = pneg %p148
    // Predicated region
    $region29: #{_contrast_depth_loss_impl.1} parent=5 // pred_check
      _
    $region30: #{_contrast_depth_loss_impl.1} parent=5 // pred_check_branch
      %151 = sbr.rel (%p148) target = $region32
    $region31: #{_contrast_depth_loss_impl.1} parent=5 // pred_region
      %s152 = ssub.s32 %s9, 1
      %p153 = scmp.lt.s32.totalorder %s14, 2
      %s154 = scalar_select %p153, %s14, 2
      %s155 = smul.addr %s154, 8
      %s156 = smul.addr %s155, 8
      %s157 = scalar_lea.vmem %s0, %s156
      %p158 = pneg %p35
      %p159 = pneg %p32
      %p160 = scmp.lt.s32.totalorder %s14, 2
      %s161 = scalar_select %p160, %s14, 2
      %s162 = smul.addr %s161, 8
      %s163 = smul.addr %s162, 8
      %s164 = scalar_lea.vmem %s1, %s163
      %p165 = pneg %p61
      %p166 = pneg %p58
      %p167 = pneg %p82
      %p168 = pneg %p79
      %p169 = pneg %p108
      %p170 = pneg %p105
      %p171 = scmp.lt.s32.totalorder %s14, 2
      %s172 = scalar_select %p171, %s14, 2
      %s173 = smul.addr %s172, 8
      %s174 = scalar_lea.vmem %s3, %s173
      %p175 = scmp.lt.s32.totalorder %s14, 2
      %s176 = scalar_select %p175, %s14, 2
      %s177 = smul.addr %s176, 8
      %s178 = smul.addr %s177, 8
      %s179 = scalar_lea.vmem %s0, %s178
      %p180 = scmp.lt.s32.totalorder %s14, 2
      %s181 = scalar_select %p180, %s14, 2
      %s182 = smul.addr %s181, 8
      %s183 = smul.addr %s182, 8
      %s184 = scalar_lea.vmem %s1, %s183
      %p185 = scmp.lt.s32.totalorder %s14, 2
      %s186 = scalar_select %p185, %s14, 2
      %s187 = smul.addr %s186, 8
      %s188 = scalar_lea.vmem %s3, %s187
      %s189 = smul.u32 0, 8
      %s190 = smul.addr %s189, 8
      %s191 = scalar_lea.vmem %s179, %s190
      %v192 = vld [vmem:[%s191] sm:$0xff]
      %v193 = vld [vmem:[%s191 + $0x8] sm:$0xff]
      %v194 = vld [vmem:[%s191 + $0x10] sm:$0xff]
      %v195 = vld [vmem:[%s191 + $0x18] sm:$0xff]
      %v196 = vld [vmem:[%s191 + $0x20] sm:$0xff]
      %v197 = vld [vmem:[%s191 + $0x28] sm:$0xff]
      %v198 = vld [vmem:[%s191 + $0x30] sm:$0xff]
      %v199 = vld [vmem:[%s191 + $0x38] sm:$0xff]
      %s200 = smul.addr %s189, 8
      %s201 = scalar_lea.vmem %s184, %s200
      %v202 = vld [vmem:[%s201] sm:$0xff]
      %v203 = vld [vmem:[%s201 + $0x8] sm:$0xff]
      %v204 = vld [vmem:[%s201 + $0x10] sm:$0xff]
      %v205 = vld [vmem:[%s201 + $0x18] sm:$0xff]
      %v206 = vld [vmem:[%s201 + $0x20] sm:$0xff]
      %v207 = vld [vmem:[%s201 + $0x28] sm:$0xff]
      %v208 = vld [vmem:[%s201 + $0x30] sm:$0xff]
      %v209 = vld [vmem:[%s201 + $0x38] sm:$0xff]
      %v210 = vsub.f32 %v192, %v202
      %v211 = vsub.f32 %v193, %v203
      %v212 = vsub.f32 %v194, %v204
      %v213 = vsub.f32 %v195, %v205
      %v214 = vsub.f32 %v196, %v206
      %v215 = vsub.f32 %v197, %v207
      %v216 = vsub.f32 %v198, %v208
      %v217 = vsub.f32 %v199, %v209
      %v218 = vmul.f32 %v210, %v210
      %v219 = vmul.f32 %v211, %v211
      %v220 = vmul.f32 %v212, %v212
      %v221 = vmul.f32 %v213, %v213
      %v222 = vmul.f32 %v214, %v214
      %v223 = vmul.f32 %v215, %v215
      %v224 = vmul.f32 %v216, %v216
      %v225 = vmul.f32 %v217, %v217
      %226 = vrot.lane.b32.xlu0 %v218, 1
      %v227 = vpop.permute.xlu0 %226
      %228 = vrot.lane.b32.xlu0 %v219, 1
      %v229 = vpop.permute.xlu0 %228
      %230 = vrot.lane.b32.xlu0 %v220, 1
      %v231 = vpop.permute.xlu0 %230
      %232 = vrot.lane.b32.xlu0 %v221, 1
      %v233 = vpop.permute.xlu0 %232
      %234 = vrot.lane.b32.xlu0 %v222, 1
      %v235 = vpop.permute.xlu0 %234
      %236 = vrot.lane.b32.xlu0 %v223, 1
      %v237 = vpop.permute.xlu0 %236
      %238 = vrot.lane.b32.xlu0 %v224, 1
      %v239 = vpop.permute.xlu0 %238
      %240 = vrot.lane.b32.xlu0 %v225, 1
      %v241 = vpop.permute.xlu0 %240
      %v242 = vlaneseq
      %v243 = vand.u32 %v242, 127
      %vm244 = vcmp.lt.s32.totalorder %v243, 1
      %v245 = vsel %vm244, %v239, %v241
      %v246 = vsel %vm244, %v237, %v239
      %v247 = vsel %vm244, %v235, %v237
      %v248 = vsel %vm244, %v233, %v235
      %v249 = vsel %vm244, %v231, %v233
      %v250 = vsel %vm244, %v229, %v231
      %v251 = vsel %vm244, %v227, %v229
      %v252 = vsel %vm244, %v241, %v227
      %v253 = vadd.f32 %v218, %v252
      %v254 = vadd.f32 %v219, %v251
      %v255 = vadd.f32 %v220, %v250
      %v256 = vadd.f32 %v221, %v249
      %v257 = vadd.f32 %v222, %v248
      %v258 = vadd.f32 %v223, %v247
      %v259 = vadd.f32 %v224, %v246
      %v260 = vadd.f32 %v225, %v245
      %261 = vrot.lane.b32.xlu0 %v218, 127
      %v262 = vpop.permute.xlu0 %261
      %263 = vrot.lane.b32.xlu0 %v219, 127
      %v264 = vpop.permute.xlu0 %263
      %265 = vrot.lane.b32.xlu0 %v220, 127
      %v266 = vpop.permute.xlu0 %265
      %267 = vrot.lane.b32.xlu0 %v221, 127
      %v268 = vpop.permute.xlu0 %267
      %269 = vrot.lane.b32.xlu0 %v222, 127
      %v270 = vpop.permute.xlu0 %269
      %271 = vrot.lane.b32.xlu0 %v223, 127
      %v272 = vpop.permute.xlu0 %271
      %273 = vrot.lane.b32.xlu0 %v224, 127
      %v274 = vpop.permute.xlu0 %273
      %275 = vrot.lane.b32.xlu0 %v225, 127
      %v276 = vpop.permute.xlu0 %275
      %vm277 = vcmp.lt.s32.totalorder %v243, 127
      %v278 = vsel %vm277, %v274, %v276
      %v279 = vsel %vm277, %v272, %v274
      %v280 = vsel %vm277, %v270, %v272
      %v281 = vsel %vm277, %v268, %v270
      %v282 = vsel %vm277, %v266, %v268
      %v283 = vsel %vm277, %v264, %v266
      %v284 = vsel %vm277, %v262, %v264
      %v285 = vsel %vm277, %v276, %v262
      %v286 = vadd.f32 %v253, %v284
      %v287 = vadd.f32 %v254, %v283
      %v288 = vadd.f32 %v255, %v282
      %v289 = vadd.f32 %v256, %v281
      %v290 = vadd.f32 %v257, %v280
      %v291 = vadd.f32 %v258, %v279
      %v292 = vadd.f32 %v259, %v278
      %v293 = vadd.f32 %v260, %v285
      %294 = vrot.lane.b32.xlu0 %v286, 32
      %v295 = vpop.permute.xlu0 %294
      %296 = vrot.lane.b32.xlu0 %v287, 32
      %v297 = vpop.permute.xlu0 %296
      %298 = vrot.lane.b32.xlu0 %v288, 32
      %v299 = vpop.permute.xlu0 %298
      %300 = vrot.lane.b32.xlu0 %v289, 32
      %v301 = vpop.permute.xlu0 %300
      %302 = vrot.lane.b32.xlu0 %v290, 32
      %v303 = vpop.permute.xlu0 %302
      %304 = vrot.lane.b32.xlu0 %v291, 32
      %v305 = vpop.permute.xlu0 %304
      %306 = vrot.lane.b32.xlu0 %v292, 32
      %v307 = vpop.permute.xlu0 %306
      %308 = vrot.lane.b32.xlu0 %v293, 32
      %v309 = vpop.permute.xlu0 %308
      %vm310 = vcmp.lt.s32.totalorder %v243, 32
      %v311 = vsel %vm310, %v307, %v309
      %v312 = vsel %vm310, %v305, %v307
      %v313 = vsel %vm310, %v303, %v305
      %v314 = vsel %vm310, %v301, %v303
      %v315 = vsel %vm310, %v299, %v301
      %v316 = vsel %vm310, %v297, %v299
      %v317 = vsel %vm310, %v295, %v297
      %v318 = vsel %vm310, %v309, %v295
      %v319 = vadd.f32 %v286, %v318
      %v320 = vadd.f32 %v287, %v317
      %v321 = vadd.f32 %v288, %v316
      %v322 = vadd.f32 %v289, %v315
      %v323 = vadd.f32 %v290, %v314
      %v324 = vadd.f32 %v291, %v313
      %v325 = vadd.f32 %v292, %v312
      %v326 = vadd.f32 %v293, %v311
      %327 = vrot.lane.b32.xlu0 %v286, 96
      %v328 = vpop.permute.xlu0 %327
      %329 = vrot.lane.b32.xlu0 %v287, 96
      %v330 = vpop.permute.xlu0 %329
      %331 = vrot.lane.b32.xlu0 %v288, 96
      %v332 = vpop.permute.xlu0 %331
      %333 = vrot.lane.b32.xlu0 %v289, 96
      %v334 = vpop.permute.xlu0 %333
      %335 = vrot.lane.b32.xlu0 %v290, 96
      %v336 = vpop.permute.xlu0 %335
      %337 = vrot.lane.b32.xlu0 %v291, 96
      %v338 = vpop.permute.xlu0 %337
      %339 = vrot.lane.b32.xlu0 %v292, 96
      %v340 = vpop.permute.xlu0 %339
      %341 = vrot.lane.b32.xlu0 %v293, 96
      %v342 = vpop.permute.xlu0 %341
      %vm343 = vcmp.lt.s32.totalorder %v243, 96
      %v344 = vsel %vm343, %v340, %v342
      %v345 = vsel %vm343, %v338, %v340
      %v346 = vsel %vm343, %v336, %v338
      %v347 = vsel %vm343, %v334, %v336
      %v348 = vsel %vm343, %v332, %v334
      %v349 = vsel %vm343, %v330, %v332
      %v350 = vsel %vm343, %v328, %v330
      %v351 = vsel %vm343, %v342, %v328
      %v352 = vadd.f32 %v319, %v350
      %v353 = vadd.f32 %v320, %v349
      %v354 = vadd.f32 %v321, %v348
      %v355 = vadd.f32 %v322, %v347
      %v356 = vadd.f32 %v323, %v346
      %v357 = vadd.f32 %v324, %v345
      %v358 = vadd.f32 %v325, %v344
      %v359 = vadd.f32 %v326, %v351
      %v360 = vmul.f32 %v210, 2.0
      %v361 = vmul.f32 %v211, 2.0
      %v362 = vmul.f32 %v212, 2.0
      %v363 = vmul.f32 %v213, 2.0
      %v364 = vmul.f32 %v214, 2.0
      %v365 = vmul.f32 %v215, 2.0
      %v366 = vmul.f32 %v216, 2.0
      %v367 = vmul.f32 %v217, 2.0
      %368 = vrot.lane.b32.xlu0 %v210, 1
      %v369 = vpop.permute.xlu0 %368
      %370 = vrot.lane.b32.xlu0 %v211, 1
      %v371 = vpop.permute.xlu0 %370
      %372 = vrot.lane.b32.xlu0 %v212, 1
      %v373 = vpop.permute.xlu0 %372
      %374 = vrot.lane.b32.xlu0 %v213, 1
      %v375 = vpop.permute.xlu0 %374
      %376 = vrot.lane.b32.xlu0 %v214, 1
      %v377 = vpop.permute.xlu0 %376
      %378 = vrot.lane.b32.xlu0 %v215, 1
      %v379 = vpop.permute.xlu0 %378
      %380 = vrot.lane.b32.xlu0 %v216, 1
      %v381 = vpop.permute.xlu0 %380
      %382 = vrot.lane.b32.xlu0 %v217, 1
      %v383 = vpop.permute.xlu0 %382
      %v384 = vsel %vm244, %v381, %v383
      %v385 = vsel %vm244, %v379, %v381
      %v386 = vsel %vm244, %v377, %v379
      %v387 = vsel %vm244, %v375, %v377
      %v388 = vsel %vm244, %v373, %v375
      %v389 = vsel %vm244, %v371, %v373
      %v390 = vsel %vm244, %v369, %v371
      %v391 = vsel %vm244, %v383, %v369
      %v392 = vadd.f32 %v210, %v391
      %v393 = vadd.f32 %v211, %v390
      %v394 = vadd.f32 %v212, %v389
      %v395 = vadd.f32 %v213, %v388
      %v396 = vadd.f32 %v214, %v387
      %v397 = vadd.f32 %v215, %v386
      %v398 = vadd.f32 %v216, %v385
      %v399 = vadd.f32 %v217, %v384
      %400 = vrot.lane.b32.xlu0 %v210, 127
      %v401 = vpop.permute.xlu0 %400
      %402 = vrot.lane.b32.xlu0 %v211, 127
      %v403 = vpop.permute.xlu0 %402
      %404 = vrot.lane.b32.xlu0 %v212, 127
      %v405 = vpop.permute.xlu0 %404
      %406 = vrot.lane.b32.xlu0 %v213, 127
      %v407 = vpop.permute.xlu0 %406
      %408 = vrot.lane.b32.xlu0 %v214, 127
      %v409 = vpop.permute.xlu0 %408
      %410 = vrot.lane.b32.xlu0 %v215, 127
      %v411 = vpop.permute.xlu0 %410
      %412 = vrot.lane.b32.xlu0 %v216, 127
      %v413 = vpop.permute.xlu0 %412
      %414 = vrot.lane.b32.xlu0 %v217, 127
      %v415 = vpop.permute.xlu0 %414
      %v416 = vsel %vm277, %v413, %v415
      %v417 = vsel %vm277, %v411, %v413
      %v418 = vsel %vm277, %v409, %v411
      %v419 = vsel %vm277, %v407, %v409
      %v420 = vsel %vm277, %v405, %v407
      %v421 = vsel %vm277, %v403, %v405
      %v422 = vsel %vm277, %v401, %v403
      %v423 = vsel %vm277, %v415, %v401
      %v424 = vadd.f32 %v392, %v422
      %v425 = vadd.f32 %v393, %v421
      %v426 = vadd.f32 %v394, %v420
      %v427 = vadd.f32 %v395, %v419
      %v428 = vadd.f32 %v396, %v418
      %v429 = vadd.f32 %v397, %v417
      %v430 = vadd.f32 %v398, %v416
      %v431 = vadd.f32 %v399, %v423
      %432 = vrot.lane.b32.xlu0 %v424, 32
      %v433 = vpop.permute.xlu0 %432
      %434 = vrot.lane.b32.xlu0 %v425, 32
      %v435 = vpop.permute.xlu0 %434
      %436 = vrot.lane.b32.xlu0 %v426, 32
      %v437 = vpop.permute.xlu0 %436
      %438 = vrot.lane.b32.xlu0 %v427, 32
      %v439 = vpop.permute.xlu0 %438
      %440 = vrot.lane.b32.xlu0 %v428, 32
      %v441 = vpop.permute.xlu0 %440
      %442 = vrot.lane.b32.xlu0 %v429, 32
      %v443 = vpop.permute.xlu0 %442
      %444 = vrot.lane.b32.xlu0 %v430, 32
      %v445 = vpop.permute.xlu0 %444
      %446 = vrot.lane.b32.xlu0 %v431, 32
      %v447 = vpop.permute.xlu0 %446
      %v448 = vsel %vm310, %v445, %v447
      %v449 = vsel %vm310, %v443, %v445
      %v450 = vsel %vm310, %v441, %v443
      %v451 = vsel %vm310, %v439, %v441
      %v452 = vsel %vm310, %v437, %v439
      %v453 = vsel %vm310, %v435, %v437
      %v454 = vsel %vm310, %v433, %v435
      %v455 = vsel %vm310, %v447, %v433
      %v456 = vadd.f32 %v424, %v455
      %v457 = vadd.f32 %v425, %v454
      %v458 = vadd.f32 %v426, %v453
      %v459 = vadd.f32 %v427, %v452
      %v460 = vadd.f32 %v428, %v451
      %v461 = vadd.f32 %v429, %v450
      %v462 = vadd.f32 %v430, %v449
      %v463 = vadd.f32 %v431, %v448
      %464 = vrot.lane.b32.xlu0 %v424, 96
      %v465 = vpop.permute.xlu0 %464
      %466 = vrot.lane.b32.xlu0 %v425, 96
      %v467 = vpop.permute.xlu0 %466
      %468 = vrot.lane.b32.xlu0 %v426, 96
      %v469 = vpop.permute.xlu0 %468
      %470 = vrot.lane.b32.xlu0 %v427, 96
      %v471 = vpop.permute.xlu0 %470
      %472 = vrot.lane.b32.xlu0 %v428, 96
      %v473 = vpop.permute.xlu0 %472
      %474 = vrot.lane.b32.xlu0 %v429, 96
      %v475 = vpop.permute.xlu0 %474
      %476 = vrot.lane.b32.xlu0 %v430, 96
      %v477 = vpop.permute.xlu0 %476
      %478 = vrot.lane.b32.xlu0 %v431, 96
      %v479 = vpop.permute.xlu0 %478
      %v480 = vsel %vm343, %v477, %v479
      %v481 = vsel %vm343, %v475, %v477
      %v482 = vsel %vm343, %v473, %v475
      %v483 = vsel %vm343, %v471, %v473
      %v484 = vsel %vm343, %v469, %v471
      %v485 = vsel %vm343, %v467, %v469
      %v486 = vsel %vm343, %v465, %v467
      %v487 = vsel %vm343, %v479, %v465
      %v488 = vadd.f32 %v456, %v486
      %v489 = vadd.f32 %v457, %v485
      %v490 = vadd.f32 %v458, %v484
      %v491 = vadd.f32 %v459, %v483
      %v492 = vadd.f32 %v460, %v482
      %v493 = vadd.f32 %v461, %v481
      %v494 = vadd.f32 %v462, %v480
      %v495 = vadd.f32 %v463, %v487
      %v496 = vmul.f32 %v360, %v488
      %v497 = vmul.f32 %v361, %v489
      %v498 = vmul.f32 %v362, %v490
      %v499 = vmul.f32 %v363, %v491
      %v500 = vmul.f32 %v364, %v492
      %v501 = vmul.f32 %v365, %v493
      %v502 = vmul.f32 %v366, %v494
      %v503 = vmul.f32 %v367, %v495
      %v504 = vsub.f32 %v352, %v496
      %v505 = vsub.f32 %v353, %v497
      %v506 = vsub.f32 %v354, %v498
      %v507 = vsub.f32 %v355, %v499
      %v508 = vsub.f32 %v356, %v500
      %v509 = vsub.f32 %v357, %v501
      %v510 = vsub.f32 %v358, %v502
      %v511 = vsub.f32 %v359, %v503
      %v512 = vmul.f32 %v218, 9.0
      %v513 = vmul.f32 %v219, 9.0
      %v514 = vmul.f32 %v220, 9.0
      %v515 = vmul.f32 %v221, 9.0
      %v516 = vmul.f32 %v222, 9.0
      %v517 = vmul.f32 %v223, 9.0
      %v518 = vmul.f32 %v224, 9.0
      %v519 = vmul.f32 %v225, 9.0
      %v520 = vadd.f32 %v504, %v512
      %v521 = vadd.f32 %v505, %v513
      %v522 = vadd.f32 %v506, %v514
      %v523 = vadd.f32 %v507, %v515
      %v524 = vadd.f32 %v508, %v516
      %v525 = vadd.f32 %v509, %v517
      %v526 = vadd.f32 %v510, %v518
      %v527 = vadd.f32 %v511, %v519
      %vm528 = vcmask 64512
      %v530 = vsel %vm528, 1.0, 0
      %532 = vmatpush.msra.mxu0 0.0
      %533 = vmatpush.msra.mxu0 0.0
      %534 = vmatpush.msra.mxu0 0.0
      %535 = vmatpush.msra.mxu0 0.0
      %536 = vmatpush.msra.mxu0 0.0
      %537 = vmatpush.msra.mxu0 0.0
      %538 = vmatpush.msra.mxu0 0.0
      %539 = vmatpush.msra.mxu0 0.0
      %540 = vmatpush.msra.mxu0 0.0
      %541 = vmatpush.msra.mxu0 0.0
      %542 = vmatpush.msra.mxu0 0.0
      %543 = vmatpush.msra.mxu0 0.0
      %544 = vmatpush.msra.mxu0 0.0
      %545 = vmatpush.msra.mxu0 0.0
      %546 = vmatpush.msra.mxu0 0.0
      %547 = vmatpush.msra.mxu0 %v520
      %548 = vmatmul.f32.gmra.mxu0 %v530
      %v549 = vpop.f32.mrf.mxu0
      %v550 = vadd.f32 0.0, %v549
      %551 = vdwg.mxu0
      %552 = vmatpush.msra.mxu0 0.0
      %553 = vmatpush.msra.mxu0 0.0
      %554 = vmatpush.msra.mxu0 0.0
      %555 = vmatpush.msra.mxu0 0.0
      %556 = vmatpush.msra.mxu0 0.0
      %557 = vmatpush.msra.mxu0 0.0
      %558 = vmatpush.msra.mxu0 0.0
      %559 = vmatpush.msra.mxu0 0.0
      %560 = vmatpush.msra.mxu0 0.0
      %561 = vmatpush.msra.mxu0 0.0
      %562 = vmatpush.msra.mxu0 0.0
      %563 = vmatpush.msra.mxu0 0.0
      %564 = vmatpush.msra.mxu0 0.0
      %565 = vmatpush.msra.mxu0 0.0
      %566 = vmatpush.msra.mxu0 0.0
      %567 = vmatpush.msra.mxu0 %v521
      %568 = vmatmul.f32.gmra.mxu0 %v530
      %v569 = vpop.f32.mrf.mxu0
      %v570 = vadd.f32 0.0, %v569
      %571 = vdwg.mxu0
      %572 = vmatpush.msra.mxu0 0.0
      %573 = vmatpush.msra.mxu0 0.0
      %574 = vmatpush.msra.mxu0 0.0
      %575 = vmatpush.msra.mxu0 0.0
      %576 = vmatpush.msra.mxu0 0.0
      %577 = vmatpush.msra.mxu0 0.0
      %578 = vmatpush.msra.mxu0 0.0
      %579 = vmatpush.msra.mxu0 0.0
      %580 = vmatpush.msra.mxu0 0.0
      %581 = vmatpush.msra.mxu0 0.0
      %582 = vmatpush.msra.mxu0 0.0
      %583 = vmatpush.msra.mxu0 0.0
      %584 = vmatpush.msra.mxu0 0.0
      %585 = vmatpush.msra.mxu0 0.0
      %586 = vmatpush.msra.mxu0 0.0
      %587 = vmatpush.msra.mxu0 %v522
      %588 = vmatmul.f32.gmra.mxu0 %v530
      %v589 = vpop.f32.mrf.mxu0
      %v590 = vadd.f32 0.0, %v589
      %591 = vdwg.mxu0
      %592 = vmatpush.msra.mxu0 0.0
      %593 = vmatpush.msra.mxu0 0.0
      %594 = vmatpush.msra.mxu0 0.0
      %595 = vmatpush.msra.mxu0 0.0
      %596 = vmatpush.msra.mxu0 0.0
      %597 = vmatpush.msra.mxu0 0.0
      %598 = vmatpush.msra.mxu0 0.0
      %599 = vmatpush.msra.mxu0 0.0
      %600 = vmatpush.msra.mxu0 0.0
      %601 = vmatpush.msra.mxu0 0.0
      %602 = vmatpush.msra.mxu0 0.0
      %603 = vmatpush.msra.mxu0 0.0
      %604 = vmatpush.msra.mxu0 0.0
      %605 = vmatpush.msra.mxu0 0.0
      %606 = vmatpush.msra.mxu0 0.0
      %607 = vmatpush.msra.mxu0 %v523
      %608 = vmatmul.f32.gmra.mxu0 %v530
      %v609 = vpop.f32.mrf.mxu0
      %v610 = vadd.f32 0.0, %v609
      %611 = vdwg.mxu0
      %612 = vmatpush.msra.mxu0 0.0
      %613 = vmatpush.msra.mxu0 0.0
      %614 = vmatpush.msra.mxu0 0.0
      %615 = vmatpush.msra.mxu0 0.0
      %616 = vmatpush.msra.mxu0 0.0
      %617 = vmatpush.msra.mxu0 0.0
      %618 = vmatpush.msra.mxu0 0.0
      %619 = vmatpush.msra.mxu0 0.0
      %620 = vmatpush.msra.mxu0 0.0
      %621 = vmatpush.msra.mxu0 0.0
      %622 = vmatpush.msra.mxu0 0.0
      %623 = vmatpush.msra.mxu0 0.0
      %624 = vmatpush.msra.mxu0 0.0
      %625 = vmatpush.msra.mxu0 0.0
      %626 = vmatpush.msra.mxu0 0.0
      %627 = vmatpush.msra.mxu0 %v524
      %628 = vmatmul.f32.gmra.mxu0 %v530
      %v629 = vpop.f32.mrf.mxu0
      %v630 = vadd.f32 0.0, %v629
      %631 = vdwg.mxu0
      %632 = vmatpush.msra.mxu0 0.0
      %633 = vmatpush.msra.mxu0 0.0
      %634 = vmatpush.msra.mxu0 0.0
      %635 = vmatpush.msra.mxu0 0.0
      %636 = vmatpush.msra.mxu0 0.0
      %637 = vmatpush.msra.mxu0 0.0
      %638 = vmatpush.msra.mxu0 0.0
      %639 = vmatpush.msra.mxu0 0.0
      %640 = vmatpush.msra.mxu0 0.0
      %641 = vmatpush.msra.mxu0 0.0
      %642 = vmatpush.msra.mxu0 0.0
      %643 = vmatpush.msra.mxu0 0.0
      %644 = vmatpush.msra.mxu0 0.0
      %645 = vmatpush.msra.mxu0 0.0
      %646 = vmatpush.msra.mxu0 0.0
      %647 = vmatpush.msra.mxu0 %v525
      %648 = vmatmul.f32.gmra.mxu0 %v530
      %v649 = vpop.f32.mrf.mxu0
      %v650 = vadd.f32 0.0, %v649
      %651 = vdwg.mxu0
      %652 = vmatpush.msra.mxu0 0.0
      %653 = vmatpush.msra.mxu0 0.0
      %654 = vmatpush.msra.mxu0 0.0
      %655 = vmatpush.msra.mxu0 0.0
      %656 = vmatpush.msra.mxu0 0.0
      %657 = vmatpush.msra.mxu0 0.0
      %658 = vmatpush.msra.mxu0 0.0
      %659 = vmatpush.msra.mxu0 0.0
      %660 = vmatpush.msra.mxu0 0.0
      %661 = vmatpush.msra.mxu0 0.0
      %662 = vmatpush.msra.mxu0 0.0
      %663 = vmatpush.msra.mxu0 0.0
      %664 = vmatpush.msra.mxu0 0.0
      %665 = vmatpush.msra.mxu0 0.0
      %666 = vmatpush.msra.mxu0 0.0
      %667 = vmatpush.msra.mxu0 %v526
      %668 = vmatmul.f32.gmra.mxu0 %v530
      %v669 = vpop.f32.mrf.mxu0
      %v670 = vadd.f32 0.0, %v669
      %671 = vdwg.mxu0
      %672 = vmatpush.msra.mxu0 0.0
      %673 = vmatpush.msra.mxu0 0.0
      %674 = vmatpush.msra.mxu0 0.0
      %675 = vmatpush.msra.mxu0 0.0
      %676 = vmatpush.msra.mxu0 0.0
      %677 = vmatpush.msra.mxu0 0.0
      %678 = vmatpush.msra.mxu0 0.0
      %679 = vmatpush.msra.mxu0 0.0
      %680 = vmatpush.msra.mxu0 0.0
      %681 = vmatpush.msra.mxu0 0.0
      %682 = vmatpush.msra.mxu0 0.0
      %683 = vmatpush.msra.mxu0 0.0
      %684 = vmatpush.msra.mxu0 0.0
      %685 = vmatpush.msra.mxu0 0.0
      %686 = vmatpush.msra.mxu0 0.0
      %687 = vmatpush.msra.mxu0 %v527
      %688 = vmatmul.f32.gmra.mxu0 %v530
      %v689 = vpop.f32.mrf.mxu0
      %v690 = vadd.f32 0.0, %v689
      %691 = vdwg.mxu0
      %v692 = vld [vmem:[%s2] sm:$0xff]
      %v694 = vperm.slane %v692, 0
      %v695 = vperm.slane %v692, 1
      %v696 = vperm.slane %v692, 2
      %v697 = vperm.slane %v692, 3
      %v698 = vperm.slane %v692, 4
      %v699 = vperm.slane %v692, 5
      %v700 = vperm.slane %v692, 6
      %v701 = vperm.slane %v692, 7
      %v710 = vmul.f32 %v550, %v694
      %v711 = vmul.f32 %v570, %v695
      %v712 = vmul.f32 %v590, %v696
      %v713 = vmul.f32 %v610, %v697
      %v714 = vmul.f32 %v630, %v698
      %v715 = vmul.f32 %v650, %v699
      %v716 = vmul.f32 %v670, %v700
      %v717 = vmul.f32 %v690, %v701
      %v718 = vadd.f32 %v710, %v711
      %v719 = vadd.f32 %v718, %v712
      %v720 = vadd.f32 %v719, %v713
      %v721 = vadd.f32 %v720, %v714
      %v722 = vadd.f32 %v721, %v715
      %v723 = vadd.f32 %v722, %v716
      %v724 = vadd.f32 %v723, %v717
      %725 = vadd.xlane.f32.xlu0 %v724
      %v726 = vpop.xlane.xlu0 %725
      %v727 = vrot.slane %v726, 4
      %v728 = vadd.f32 %v726, %v727
      %v729 = vrot.slane %v728, 2
      %v730 = vadd.f32 %v728, %v729
      %v731 = vrot.slane %v730, 1
      %v732 = vadd.f32 %v730, %v731
      %s733 = vtos %v732
      %s734 = smul.f32 %s733, 0.125
      %v735 = vstv %s734
      %v736 = vadd.f32 %v735, 0.0
      %737 = vst [vmem:[%s188] sm:$0xff] %v736
      %p738 = scmp.lt.s32.totalorder %s14, 2
      %s739 = scalar_select %p738, %s14, 2
      %s740 = smul.addr %s739, 8
      %s741 = scalar_lea.vmem %s3, %s740
      // Predicated region
      $region33: #{_contrast_depth_loss_impl.1} parent=31 // pred_check
        %p742 = pneg %p105
      $region34: #{_contrast_depth_loss_impl.1} parent=31 // pred_check_branch
        %744 = sbr.rel (%p742) target = $region36
      $region35: #{_contrast_depth_loss_impl.1} parent=31 // pred_region
        _
      $region36: #{_contrast_depth_loss_impl.1} parent=31 // pred_fallthru
        _
    $region32: #{_contrast_depth_loss_impl.1} parent=5 // pred_fallthru
      _
    %p745 = scmp.le.s32.totalorder 2, %s9
    // Predicated region
    $region37: #{_contrast_depth_loss_impl.1} parent=5 // pred_check
      %p746 = pneg %p745
    $region38: #{_contrast_depth_loss_impl.1} parent=5 // pred_check_branch
      %748 = sbr.rel (%p746) target = $region40
    $region39: #{_contrast_depth_loss_impl.1} parent=5 // pred_region
      %s749 = ssub.s32 %s9, 2
      // Predicated region
      $region41: #{_contrast_depth_loss_impl.1} parent=39 // pred_check
        %p750 = pneg %p111
      $region42: #{_contrast_depth_loss_impl.1} parent=39 // pred_check_branch
        %752 = sbr.rel (%p750) target = $region44
      $region43: #{_contrast_depth_loss_impl.1} parent=39 // pred_region
        %p753 = scmp.lt.s32.totalorder %s15, 2
        %s754 = scalar_select %p753, %s15, 2
        %s755 = smul.addr %s754, 8
        %s756 = scalar_lea.vmem %s3, %s755
      $region44: #{_contrast_depth_loss_impl.1} parent=39 // pred_fallthru
        _
    $region40: #{_contrast_depth_loss_impl.1} parent=5 // pred_fallthru
      _
  $region6: #{_contrast_depth_loss_impl.1} parent=0 // loop_footer
    %s13 = sadd.s32 1, %s9
  $region7: #{_contrast_depth_loss_impl.1} parent=0 // loop_footer_branch
    %8 = sbr.rel target = $region3
  $region8: #{_contrast_depth_loss_impl.1} parent=0 // loop_exit
    _

</llo_original>
